<compile_context>
chip_gen: v5e
topology: v5e:2x2
jax: 0.10.0
libtpu: 0.0.40
codegen_flags: <defaults>
</compile_context>

<pallas_src>
import jax
import jax.numpy as jnp
import numpy as np
from jax import lax
from jax.experimental import pallas as pl
from jax.experimental.pallas import tpu as pltpu

KD, KH, KW = 3, 2, 2          # kernel_size
SD, SH, SW = 2, 2, 1          # stride
PD, PH, PW = 2, 2, 2          # padding
CIN = COUT = 16               # channels fixed by the module
K = CIN * KD * KH * KW        # 192 -- contraction depth of the im2col GEMM


def _gemm_bias_relu_logsoftmax_kernel(p_ref, w_ref, b_ref, o_ref):
    # p_ref: (K, TM)    bf16  im2col patches (K on sublanes, spatial on lanes)
    # w_ref: (COUT, K)  bf16  folded conv weight
    # b_ref: (COUT, 1)  f32   conv bias
    # o_ref: (COUT, TM) f32   log-probabilities, channels-first, lane-dense
    acc = jnp.dot(w_ref[...], p_ref[...],
                  preferred_element_type=jnp.float32)        # (COUT, TM) f32
    acc = acc + b_ref[...]                                   # bias (lane broadcast)
    acc = jnp.maximum(acc, 0.0)                              # ReLU
    # numerically-stable log_softmax over the 16 channel sublanes
    m = jnp.max(acc, axis=0, keepdims=True)                  # (1, TM)
    s = acc - m
    lse = jnp.log(jnp.sum(jnp.exp(s), axis=0, keepdims=True))
    o_ref[...] = s - lse


def _round_up(a, b):
    return ((a + b - 1) // b) * b


def net_1d_forward(x_ncdhw, weight, bias, *, tm_max=32768):
    # x_ncdhw: (N, 16, D, H, W) ; weight: (16, 16, 3, 2, 2) ; bias: (16,)
    n, cin, d, h, w = x_ncdhw.shape
    assert cin == CIN
    od = (d + 2 * PD - KD) // SD + 1
    oh = (h + 2 * PH - KH) // SH + 1
    ow = (w + 2 * PW - KW) // SW + 1
    msp = od * oh * ow                                       # spatial size per batch

    # --- glue: bf16 zero-pad + im2col, K order = (kd, kh, kw, cin) major->minor.
    # Stacking along axis=1 keeps batch leading, so the reshape to (N, K, Msp) is
    # contiguous: no big transpose, everything fuses into one pass.
    xp = jnp.pad(x_ncdhw.astype(jnp.bfloat16),
                 ((0, 0), (0, 0), (PD, PD), (PH, PH), (PW, PW)))
    taps = []
    for kd in range(KD):
        for kh in range(KH):
            for kw in range(KW):
                taps.append(lax.slice(
                    xp,
                    (0, 0, kd, kh, kw),
                    (n, cin,
                     kd + (od - 1) * SD + 1,
                     kh + (oh - 1) * SH + 1,
                     kw + (ow - 1) * SW + 1),
                    (1, 1, SD, SH, SW)))                     # (N, CIN, od, oh, ow)
    patches = jnp.stack(taps, axis=1)                        # (N, 12, CIN, od, oh, ow)
    patches = patches.reshape(n, K, msp)                     # (N, K, Msp) -- free reshape

    # weight (O, I, KD, KH, KW) -> (O, KD, KH, KW, I) -> (COUT, K); matches K order.
    w2 = jnp.transpose(weight, (0, 2, 3, 4, 1)).reshape(COUT, K).astype(jnp.bfloat16)
    b2 = bias.reshape(COUT, 1).astype(jnp.float32)

    # --- tiling: large lane-dense spatial tiles; no explicit M padding (Pallas
    # masks the partial last block, garbage lanes never reach the output).
    tm_max = max(128, (tm_max // 128) * 128)                 # defensive 128-multiple
    tm = min(tm_max, _round_up(msp, 128))
    n_tiles = (msp + tm - 1) // tm

    # --- VMEM budget: double-buffered patch/out blocks + weights + headroom,
    # capped safely under the physical VMEM (64 MiB on v7x, 128 MiB on v5e/v6e).
    try:
        vmem_cap = int(pltpu.get_tpu_info().vmem_capacity_bytes)
    except Exception:
        vmem_cap = 64 * 1024 * 1024                          # conservative (v7x)
    need = (2 * (K * tm * 2)          # patches blocks, bf16, double-buffered
            + 2 * (COUT * tm * 4)     # output blocks, f32, double-buffered
            + COUT * K * 2 + COUT * 4 # weights + bias
            + (4 << 20))              # Mosaic internal scratch headroom
    vmem_limit = int(min(max(need, 16 << 20), int(vmem_cap * 0.85)))

    cost = pl.CostEstimate(
        flops=2 * K * COUT * n * msp,
        transcendentals=17 * n * msp,                        # 16 exp + 1 log per column
        bytes_accessed=n * msp * (2 * K + 4 * COUT) + 2 * COUT * K + 4 * COUT)

    out3 = pl.pallas_call(
        _gemm_bias_relu_logsoftmax_kernel,
        out_shape=jax.ShapeDtypeStruct((n, COUT, msp), jnp.float32),
        grid_spec=pltpu.PrefetchScalarGridSpec(
            num_scalar_prefetch=0,
            grid=(n, n_tiles),                               # batch x spatial tiles
            in_specs=[
                pl.BlockSpec((pl.Squeezed(), K, tm), lambda b, i: (b, 0, i)),
                pl.BlockSpec((COUT, K), lambda b, i: (0, 0)),
                pl.BlockSpec((COUT, 1), lambda b, i: (0, 0)),
            ],
            out_specs=pl.BlockSpec((pl.Squeezed(), COUT, tm), lambda b, i: (b, 0, i)),
        ),
        compiler_params=pltpu.CompilerParams(
            dimension_semantics=("parallel", "parallel"),
            vmem_limit_bytes=vmem_limit),
        cost_estimate=cost,
    )(patches, w2, b2)

    # (N, COUT, Msp) -> (N, COUT, od, oh, ow): free reshape, no transpose needed.
    return out3.reshape(n, COUT, od, oh, ow)


if __name__ == "__main__":
    key = jax.random.PRNGKey(0)
    kx, kw_, kb = jax.random.split(key, 3)

    # Small shapes consistent with the module (original spec used (10, 16, 30, 32, 34)).
    N, D, H, W = 2, 6, 8, 13
    x = jax.random.normal(kx, (N, CIN, D, H, W), jnp.float32)

    # Deterministic parameter init (uniform, PyTorch-style fan-in bound).
    fan_in = CIN * KD * KH * KW
    bound = 1.0 / float(np.sqrt(fan_in))
    weight = jax.random.uniform(kw_, (COUT, CIN, KD, KH, KW), jnp.float32, -bound, bound)
    bias = jax.random.uniform(kb, (COUT,), jnp.float32, -bound, bound)

    out = jax.jit(net_1d_forward)(x, weight, bias)
    out = jax.block_until_ready(out)

    # Pure-JAX f32 reference for validation.
    conv = lax.conv_general_dilated(
        x, weight, window_strides=(SD, SH, SW),
        padding=((PD, PD), (PH, PH), (PW, PW)),
        dimension_numbers=("NCDHW", "OIDHW", "NCDHW"),
        precision=lax.Precision.HIGHEST)
    conv = conv + bias[None, :, None, None, None]
    ref = jax.nn.log_softmax(jnp.maximum(conv, 0.0), axis=1)

    expected_shape = (N, COUT,
                      (D + 2 * PD - KD) // SD + 1,
                      (H + 2 * PH - KH) // SH + 1,
                      (W + 2 * PW - KW) // SW + 1)
    assert out.shape == expected_shape, (out.shape, expected_shape)
    np.testing.assert_allclose(np.asarray(out), np.asarray(ref), atol=2e-2, rtol=2e-2)

    print("KERNEL_OK")
</pallas_src>

<mosaic_0001>
module attributes {stable_mosaic.version = 11 : i64} {
  func.func @_gemm_bias_relu_logsoftmax_kernel(%arg0: i32, %arg1: i32, %arg2: memref<1x192x384xbf16, #tpu.memory_space<vmem>>, %arg3: memref<16x192xbf16, #tpu.memory_space<vmem>>, %arg4: memref<16x1xf32, #tpu.memory_space<vmem>>, %arg5: memref<1x16x384xf32, #tpu.memory_space<vmem>>) attributes {dimension_semantics = [#tpu.dimension_semantics<parallel>, #tpu.dimension_semantics<parallel>], iteration_bounds = array<i64: 2, 1>, scalar_prefetch = 0 : i64, scratch_operands = 0 : i64, tpu.core_type = #tpu.core_type<tc>, window_params = [{transform_indices = @transform_0, window_bounds = array<i64: 1, 192, 384>}, {pipeline_mode = #tpu.pipeline_mode<synchronous>, transform_indices = @transform_1, window_bounds = array<i64: 16, 192>}, {pipeline_mode = #tpu.pipeline_mode<synchronous>, transform_indices = @transform_2, window_bounds = array<i64: 16, 1>}, {transform_indices = @transform_3, window_bounds = array<i64: 1, 16, 384>}]} {
    %c0 = arith.constant 0 : index
    %c0_0 = arith.constant 0 : index
    %0 = vector.load %arg3[%c0, %c0_0] : memref<16x192xbf16, #tpu.memory_space<vmem>>, vector<16x192xbf16>
    %c0_1 = arith.constant 0 : index
    %c0_2 = arith.constant 0 : index
    %c0_3 = arith.constant 0 : index
    %1 = vector.load %arg2[%c0_1, %c0_2, %c0_3] : memref<1x192x384xbf16, #tpu.memory_space<vmem>>, vector<1x192x384xbf16>
    %2 = vector.shape_cast %1 : vector<1x192x384xbf16> to vector<192x384xbf16>
    %cst = arith.constant dense<0.000000e+00> : vector<16x384xf32>
    %3 = tpu.matmul %0, %2, %cst {dimension_numbers = #tpu.dot_dimension_numbers<[1], [0], [0], [1], [0, 0, 1, 1], [], []>} : vector<16x192xbf16>, vector<192x384xbf16>, vector<16x384xf32> -> vector<16x384xf32>
    %c0_4 = arith.constant 0 : index
    %c0_5 = arith.constant 0 : index
    %4 = vector.load %arg4[%c0_4, %c0_5] : memref<16x1xf32, #tpu.memory_space<vmem>>, vector<16x1xf32>
    %5 = vector.broadcast %4 : vector<16x1xf32> to vector<16x384xf32>
    %6 = arith.addf %3, %5 : vector<16x384xf32>
    %cst_6 = arith.constant 0.000000e+00 : f32
    %7 = vector.broadcast %cst_6 : f32 to vector<16x384xf32>
    %8 = arith.maximumf %6, %7 : vector<16x384xf32>
    %cst_7 = arith.constant dense<0xFF800000> : vector<384xf32>
    %9 = vector.multi_reduction <maximumf>, %8, %cst_7 [0] : vector<16x384xf32> to vector<384xf32>
    %10 = vector.shape_cast %9 : vector<384xf32> to vector<1x384xf32>
    %11 = vector.broadcast %10 : vector<1x384xf32> to vector<16x384xf32>
    %12 = arith.subf %8, %11 : vector<16x384xf32>
    %13 = math.exp %12 : vector<16x384xf32>
    %cst_8 = arith.constant dense<0.000000e+00> : vector<384xf32>
    %14 = vector.multi_reduction <add>, %13, %cst_8 [0] : vector<16x384xf32> to vector<384xf32>
    %15 = vector.shape_cast %14 : vector<384xf32> to vector<1x384xf32>
    %16 = math.log %15 : vector<1x384xf32>
    %17 = vector.broadcast %16 : vector<1x384xf32> to vector<16x384xf32>
    %18 = arith.subf %12, %17 : vector<16x384xf32>
    %c0_9 = arith.constant 0 : index
    %c0_10 = arith.constant 0 : index
    %c0_11 = arith.constant 0 : index
    %19 = vector.load %arg5[%c0_9, %c0_10, %c0_11] : memref<1x16x384xf32, #tpu.memory_space<vmem>>, vector<1x16x384xf32>
    %20 = vector.shape_cast %19 : vector<1x16x384xf32> to vector<16x384xf32>
    %21 = vector.shape_cast %18 : vector<16x384xf32> to vector<1x16x384xf32>
    tpu.vector_store %arg5[%c0_9, %c0_10, %c0_11], %21 {strides = array<i32>} : memref<1x16x384xf32, #tpu.memory_space<vmem>>, vector<1x16x384xf32>,
    return
  }
  func.func @transform_0(%arg0: i32, %arg1: i32) -> (i32, i32, i32) {
    %c0_i32 = arith.constant 0 : i32
    %c0_i32_0 = arith.constant 0 : i32
    return %arg0, %c0_i32, %arg1 : i32, i32, i32
  }
  func.func @transform_1(%arg0: i32, %arg1: i32) -> (i32, i32) {
    %c0_i32 = arith.constant 0 : i32
    %c0_i32_0 = arith.constant 0 : i32
    %c0_i32_1 = arith.constant 0 : i32
    return %c0_i32, %c0_i32_0 : i32, i32
  }
  func.func @transform_2(%arg0: i32, %arg1: i32) -> (i32, i32) {
    %c0_i32 = arith.constant 0 : i32
    %c0_i32_0 = arith.constant 0 : i32
    %c0_i32_1 = arith.constant 0 : i32
    return %c0_i32, %c0_i32_0 : i32, i32
  }
  func.func @transform_3(%arg0: i32, %arg1: i32) -> (i32, i32, i32) {
    %c0_i32 = arith.constant 0 : i32
    %c0_i32_0 = arith.constant 0 : i32
    return %arg0, %c0_i32, %arg1 : i32, i32, i32
  }
}

</mosaic_0001>

<llo_original>
// kernel: net_1d_forward.1
$region0: #{net_1d_forward.1}
  #allocation0 [shape = 'u32[]', space=smem, size = 0x4, offset = 0x4, fixed_abs, tag = 'smem constant byte address 0x4 - core index']
  #allocation1 [shape = 'u32[72,128]{1,0:T(1,128)}', space=vmem, size = 0x9000, scoped, tag = 'internal scratch']
  %s0 = inlined_call_operand.vmem [shape: bf16[2,192,384], index: 0, kind: input, shape index: {}]
  %s1 = inlined_call_operand.vmem [shape: bf16[16,192], index: 1, kind: input, shape index: {}]
  %s2 = inlined_call_operand.vmem [shape: f32[16,1], index: 2, kind: input, shape index: {}]
  %s3 = inlined_call_operand.vmem [shape: f32[2,16,384], index: 3, kind: output, shape index: {}]
  %s4 = sld [smem:[#allocation0]]
  $region45: #{net_1d_forward.1} parent=0
    _
  %s6 = ssub.s32 1, %s4
  %s7 = scalar_select 0, %s6, %s4
  loop: start=0, step=1, limit=4
  $region2: #{net_1d_forward.1} parent=0 // loop_pre_header
    _
  $region3: #{net_1d_forward.1} parent=0 // loop_header
    %s9 = sphi 0, %s13
    %p10 = scmp.ge.s32.totalorder %s9, 4
    %s16 = sphi 0, %s28
    %s17 = sphi 0, %s24
    %s18 = sphi 0, %s16
    %s19 = sphi 0, %s17
    %s20 = sphi 0, %s18
    %s21 = sphi 0, %s19
    %s33 = sphi 0, %s35
    %s36 = sphi 0, %s33
    %s37 = sphi 0, %s36
    %s53 = sphi 0, %s37
    %s57 = sphi 0, %s57
    %s59 = sphi 0, %s57
    %s60 = sphi 0, %s59
    %s74 = sphi 0, %s60
    %s78 = sphi 0, %s78
    %s80 = sphi 0, %s78
    %s81 = sphi 0, %s80
    %s95 = sphi 0, %s81
    %s103 = sphi 0, %s105
    %s106 = sphi 0, %s103
    %s107 = sphi 0, %s106
    %s123 = sphi 0, %s107
  $region4: #{net_1d_forward.1} parent=0 // loop_header_branch
    %12 = sbr.rel (%p10) target = $region8
  $region5: #{net_1d_forward.1} parent=0 // loop_body
    %s14 = ssub.s32 %s9, 1
    %s15 = ssub.s32 %s9, 2
    %s22 = sadd.s32 1, %s17
    %p23 = scmp.ge.s32.totalorder %s22, 1
    %s24 = scalar_select %p23, 0, %s22
    %s25 = sadd.s32 1, %s16
    %s26 = scalar_select %p23, %s25, %s16
    %p27 = scmp.ge.s32.totalorder %s26, 2
    %s28 = scalar_select %p27, 0, %s26
    %s29 = ssub.s32 %s16, %s28
    %s30 = ssub.s32 %s17, %s24
    %s31 = sor.u32 %s29, %s30
    %p32 = scmp.eq.s32.totalorder %s31, 0
    %s34 = sadd.s32 %s33, 1
    %s35 = scalar_select %p32, %s33, %s34
    %p38 = pneg %p32
    %p39 = scmp.eq.s32.totalorder %s9, 1
    %p40 = por %p38, %p39
    %p41 = scmp.ne.s32.totalorder %s33, %s36
    %p42 = scmp.eq.s32.totalorder %s9, 0
    %p43 = por %p41, %p42
    %p44 = scmp.ne.s32.totalorder %s33, %s36
    %p45 = scmp.eq.s32.totalorder %s14, 1
    %p46 = por %p44, %p45
    %p47 = scmp.ne.s32.totalorder %s36, %s37
    %p48 = scmp.eq.s32.totalorder %s14, 0
    %p49 = por %p47, %p48
    %p50 = scmp.ne.s32.totalorder %s36, %s37
    %p51 = scmp.eq.s32.totalorder %s15, 1
    %p52 = por %p50, %p51
    %p54 = scmp.ne.s32.totalorder %s37, %s53
    %p55 = scmp.eq.s32.totalorder %s15, 0
    %p56 = por %p54, %p55
    %s58 = sadd.s32 %s57, 1
    %p61 = scmp.eq.s32.totalorder %s9, 1
    %p62 = scmp.ne.s32.totalorder %s57, %s59
    %p63 = scmp.eq.s32.totalorder %s9, 0
    %p64 = por %p62, %p63
    %p65 = scmp.ne.s32.totalorder %s57, %s59
    %p66 = scmp.eq.s32.totalorder %s14, 1
    %p67 = por %p65, %p66
    %p68 = scmp.ne.s32.totalorder %s59, %s60
    %p69 = scmp.eq.s32.totalorder %s14, 0
    %p70 = por %p68, %p69
    %p71 = scmp.ne.s32.totalorder %s59, %s60
    %p72 = scmp.eq.s32.totalorder %s15, 1
    %p73 = por %p71, %p72
    %p75 = scmp.ne.s32.totalorder %s60, %s74
    %p76 = scmp.eq.s32.totalorder %s15, 0
    %p77 = por %p75, %p76
    %s79 = sadd.s32 %s78, 1
    %p82 = scmp.eq.s32.totalorder %s9, 1
    %p83 = scmp.ne.s32.totalorder %s78, %s80
    %p84 = scmp.eq.s32.totalorder %s9, 0
    %p85 = por %p83, %p84
    %p86 = scmp.ne.s32.totalorder %s78, %s80
    %p87 = scmp.eq.s32.totalorder %s14, 1
    %p88 = por %p86, %p87
    %p89 = scmp.ne.s32.totalorder %s80, %s81
    %p90 = scmp.eq.s32.totalorder %s14, 0
    %p91 = por %p89, %p90
    %p92 = scmp.ne.s32.totalorder %s80, %s81
    %p93 = scmp.eq.s32.totalorder %s15, 1
    %p94 = por %p92, %p93
    %p96 = scmp.ne.s32.totalorder %s81, %s95
    %p97 = scmp.eq.s32.totalorder %s15, 0
    %p98 = por %p96, %p97
    %s99 = ssub.s32 %s16, %s28
    %s100 = ssub.s32 %s17, %s24
    %s101 = sor.u32 %s99, %s100
    %p102 = scmp.eq.s32.totalorder %s101, 0
    %s104 = sadd.s32 %s103, 1
    %s105 = scalar_select %p102, %s103, %s104
    %p108 = pneg %p102
    %p109 = scmp.eq.s32.totalorder %s9, 1
    %p110 = por %p108, %p109
    %p111 = scmp.ne.s32.totalorder %s103, %s106
    %p112 = scmp.eq.s32.totalorder %s9, 0
    %p113 = por %p111, %p112
    %p114 = scmp.ne.s32.totalorder %s103, %s106
    %p115 = scmp.eq.s32.totalorder %s14, 1
    %p116 = por %p114, %p115
    %p117 = scmp.ne.s32.totalorder %s106, %s107
    %p118 = scmp.eq.s32.totalorder %s14, 0
    %p119 = por %p117, %p118
    %p120 = scmp.ne.s32.totalorder %s106, %s107
    %p121 = scmp.eq.s32.totalorder %s15, 1
    %p122 = por %p120, %p121
    %p124 = scmp.ne.s32.totalorder %s107, %s123
    %p125 = scmp.eq.s32.totalorder %s15, 0
    %p126 = por %p124, %p125
    %p127 = scmp.le.s32.totalorder 1, %s9
    %p128 = scmp.lt.s32.totalorder %s9, 3
    %p129 = pnand %p127, %p128
    %p130 = pneg %p129
    // Predicated region
    $region9: #{net_1d_forward.1} parent=5 // pred_check
      _
    $region10: #{net_1d_forward.1} parent=5 // pred_check_branch
      %132 = sbr.rel (%p129) target = $region12
    $region11: #{net_1d_forward.1} parent=5 // pred_region
      %s133 = ssub.s32 %s9, 1
      // Predicated region
      $region13: #{net_1d_forward.1} parent=11 // pred_check
        %p134 = pneg %p70
      $region14: #{net_1d_forward.1} parent=11 // pred_check_branch
        %136 = sbr.rel (%p134) target = $region16
      $region15: #{net_1d_forward.1} parent=11 // pred_region
        _
      $region16: #{net_1d_forward.1} parent=11 // pred_fallthru
        _
      // Predicated region
      $region17: #{net_1d_forward.1} parent=11 // pred_check
        %p137 = pneg %p91
      $region18: #{net_1d_forward.1} parent=11 // pred_check_branch
        %139 = sbr.rel (%p137) target = $region20
      $region19: #{net_1d_forward.1} parent=11 // pred_region
        _
      $region20: #{net_1d_forward.1} parent=11 // pred_fallthru
        _
    $region12: #{net_1d_forward.1} parent=5 // pred_fallthru
      _
    %p140 = scmp.lt.s32.totalorder %s9, 2
    // Predicated region
    $region21: #{net_1d_forward.1} parent=5 // pred_check
      %p141 = pneg %p140
    $region22: #{net_1d_forward.1} parent=5 // pred_check_branch
      %143 = sbr.rel (%p141) target = $region24
    $region23: #{net_1d_forward.1} parent=5 // pred_region
      // Predicated region
      $region25: #{net_1d_forward.1} parent=23 // pred_check
        %p144 = pneg %p43
      $region26: #{net_1d_forward.1} parent=23 // pred_check_branch
        %146 = sbr.rel (%p144) target = $region28
      $region27: #{net_1d_forward.1} parent=23 // pred_region
        %s147 = smul.u32 3, %s17
        %p148 = scmp.lt.s32.totalorder %s16, 1
        %s149 = scalar_select %p148, %s16, 1
        %p150 = scmp.lt.s32.totalorder %s147, 2
        %s151 = scalar_select %p150, %s147, 2
        %s152 = smul.addr %s149, 72
        %s153 = sadd.s32 %s151, %s152
        %s154 = smul.addr %s153, 4
        %s155 = scalar_lea.vmem %s0, %s154
        %s156 = smul.u32 3, %s17
      $region28: #{net_1d_forward.1} parent=23 // pred_fallthru
        _
    $region24: #{net_1d_forward.1} parent=5 // pred_fallthru
      _
    %p157 = scmp.le.s32.totalorder 1, %s9
    %p158 = scmp.lt.s32.totalorder %s9, 3
    %p159 = pnand %p157, %p158
    %p160 = pneg %p159
    // Predicated region
    $region29: #{net_1d_forward.1} parent=5 // pred_check
      _
    $region30: #{net_1d_forward.1} parent=5 // pred_check_branch
      %162 = sbr.rel (%p159) target = $region32
    $region31: #{net_1d_forward.1} parent=5 // pred_region
      %s163 = ssub.s32 %s9, 1
      %s164 = smul.u32 3, %s19
      %p165 = scmp.lt.s32.totalorder %s18, 1
      %s166 = scalar_select %p165, %s18, 1
      %p167 = scmp.lt.s32.totalorder %s164, 2
      %s168 = scalar_select %p167, %s164, 2
      %s169 = smul.addr %s166, 72
      %s170 = sadd.s32 %s168, %s169
      %s171 = smul.addr %s170, 4
      %s172 = scalar_lea.vmem %s0, %s171
      %p173 = pneg %p49
      %p174 = pneg %p46
      %p175 = pneg %p70
      %p176 = pneg %p67
      %p177 = pneg %p91
      %p178 = pneg %p88
      %p179 = pneg %p119
      %p180 = pneg %p116
      %s181 = smul.u32 3, %s19
      %p182 = scmp.lt.s32.totalorder %s18, 1
      %s183 = scalar_select %p182, %s18, 1
      %p184 = scmp.lt.s32.totalorder %s181, 2
      %s185 = scalar_select %p184, %s181, 2
      %s186 = smul.addr %s183, 6
      %s187 = sadd.s32 %s185, %s186
      %s188 = smul.addr %s187, 8
      %s189 = scalar_lea.vmem %s3, %s188
      %s190 = smul.u32 3, %s19
      %p191 = scmp.lt.s32.totalorder %s18, 1
      %s192 = scalar_select %p191, %s18, 1
      %p193 = scmp.lt.s32.totalorder %s190, 2
      %s194 = scalar_select %p193, %s190, 2
      %s195 = smul.addr %s192, 72
      %s196 = sadd.s32 %s194, %s195
      %s197 = smul.addr %s196, 4
      %s198 = scalar_lea.vmem %s0, %s197
      %s199 = smul.u32 3, %s19
      %s200 = smul.u32 3, %s19
      %p201 = scmp.lt.s32.totalorder %s18, 1
      %s202 = scalar_select %p201, %s18, 1
      %p203 = scmp.lt.s32.totalorder %s200, 2
      %s204 = scalar_select %p203, %s200, 2
      %s205 = smul.addr %s202, 6
      %s206 = sadd.s32 %s204, %s205
      %s207 = smul.addr %s206, 8
      %s208 = scalar_lea.vmem %s3, %s207
      %s209 = smul.u32 3, %s19
      %v211 = vld [vmem:[%s1] sm:$0xff]
      %v212 = vld [vmem:[%s1 + $0x8] sm:$0xff]
      %v213 = vld [vmem:[%s198] sm:$0xff]
      %v214 = vld [vmem:[%s198 + $0x8] sm:$0xf]
      %v215 = vld [vmem:[%s198 + $0xc] sm:$0xff]
      %v216 = vld [vmem:[%s198 + $0x14] sm:$0xf]
      %v217 = vld [vmem:[%s198 + $0x18] sm:$0xff]
      %v218 = vld [vmem:[%s198 + $0x20] sm:$0xf]
      %v219 = vld [vmem:[%s198 + $0x24] sm:$0xff]
      %v220 = vld [vmem:[%s198 + $0x2c] sm:$0xf]
      %v221 = vld [vmem:[%s198 + $0x30] sm:$0xff]
      %v222 = vld [vmem:[%s198 + $0x38] sm:$0xf]
      %v223 = vld [vmem:[%s198 + $0x3c] sm:$0xff]
      %v224 = vld [vmem:[%s198 + $0x44] sm:$0xf]
      %v225 = vld [vmem:[%s198 + $0x48] sm:$0xff]
      %v226 = vld [vmem:[%s198 + $0x50] sm:$0xf]
      %v227 = vld [vmem:[%s198 + $0x54] sm:$0xff]
      %v228 = vld [vmem:[%s198 + $0x5c] sm:$0xf]
      %v229 = vld [vmem:[%s198 + $0x60] sm:$0xff]
      %v230 = vld [vmem:[%s198 + $0x68] sm:$0xf]
      %v231 = vld [vmem:[%s198 + $0x6c] sm:$0xff]
      %v232 = vld [vmem:[%s198 + $0x74] sm:$0xf]
      %v233 = vld [vmem:[%s198 + $0x78] sm:$0xff]
      %v234 = vld [vmem:[%s198 + $0x80] sm:$0xf]
      %v235 = vld [vmem:[%s198 + $0x84] sm:$0xff]
      %v236 = vld [vmem:[%s198 + $0x8c] sm:$0xf]
      %v237 = vld [vmem:[%s198 + $0x90] sm:$0xff]
      %v238 = vld [vmem:[%s198 + $0x98] sm:$0xf]
      %v239 = vld [vmem:[%s198 + $0x9c] sm:$0xff]
      %v240 = vld [vmem:[%s198 + $0xa4] sm:$0xf]
      %v241 = vld [vmem:[%s198 + $0xa8] sm:$0xff]
      %v242 = vld [vmem:[%s198 + $0xb0] sm:$0xf]
      %v243 = vld [vmem:[%s198 + $0xb4] sm:$0xff]
      %v244 = vld [vmem:[%s198 + $0xbc] sm:$0xf]
      %v245 = vld [vmem:[%s198 + $0xc0] sm:$0xff]
      %v246 = vld [vmem:[%s198 + $0xc8] sm:$0xf]
      %v247 = vld [vmem:[%s198 + $0xcc] sm:$0xff]
      %v248 = vld [vmem:[%s198 + $0xd4] sm:$0xf]
      %v249 = vld [vmem:[%s198 + $0xd8] sm:$0xff]
      %v250 = vld [vmem:[%s198 + $0xe0] sm:$0xf]
      %v251 = vld [vmem:[%s198 + $0xe4] sm:$0xff]
      %v252 = vld [vmem:[%s198 + $0xec] sm:$0xf]
      %v253 = vld [vmem:[%s198 + $0xf0] sm:$0xff]
      %v254 = vld [vmem:[%s198 + $0xf8] sm:$0xf]
      %v255 = vld [vmem:[%s198 + $0xfc] sm:$0xff]
      %v256 = vld [vmem:[%s198 + $0x104] sm:$0xf]
      %v257 = vld [vmem:[%s198 + $0x108] sm:$0xff]
      %v258 = vld [vmem:[%s198 + $0x110] sm:$0xf]
      %v259 = vld [vmem:[%s198 + $0x114] sm:$0xff]
      %v260 = vld [vmem:[%s198 + $0x11c] sm:$0xf]
      %v261 = vld [vmem:[%s2] sm:$0xff]
      %v262 = vld [vmem:[%s2 + $0x8] sm:$0xff]
      %264 = vset.pattern.permute.xlu0 0
      %265 = vperm.xlu0 %264, %v261
      %v266 = vpop.permute.xlu0 %265
      %269 = vset.pattern.permute.xlu0 0
      %270 = vperm.xlu0 %269, %v262
      %v271 = vpop.permute.xlu0 %270
      %v275 = vunpack.c.l.b16 %v211
      %v276 = vunpack.c.h.b16 %v211
      %v277 = vunpack.c.l.b16 %v212
      %v278 = vunpack.c.h.b16 %v212
      %v279 = vpack.c.b16 %v277, %v275
      %v280 = vpack.c.b16 %v278, %v276
      %v330 = vunpack.c.l.b16 %v213
      %v331 = vunpack.c.h.b16 %v213
      %v332 = vunpack.c.l.b16 %v214
      %v333 = vunpack.c.l.b16 %v215
      %v334 = vunpack.c.h.b16 %v215
      %v335 = vunpack.c.l.b16 %v216
      %v336 = vunpack.c.l.b16 %v217
      %v337 = vunpack.c.h.b16 %v217
      %v338 = vunpack.c.l.b16 %v218
      %v339 = vunpack.c.l.b16 %v219
      %v340 = vunpack.c.h.b16 %v219
      %v341 = vunpack.c.l.b16 %v220
      %v342 = vunpack.c.l.b16 %v221
      %v343 = vunpack.c.h.b16 %v221
      %v344 = vunpack.c.l.b16 %v222
      %v345 = vunpack.c.l.b16 %v223
      %v346 = vunpack.c.h.b16 %v223
      %v347 = vunpack.c.l.b16 %v224
      %v348 = vunpack.c.l.b16 %v225
      %v349 = vunpack.c.h.b16 %v225
      %v350 = vunpack.c.l.b16 %v226
      %v351 = vunpack.c.l.b16 %v227
      %v352 = vunpack.c.h.b16 %v227
      %v353 = vunpack.c.l.b16 %v228
      %v354 = vunpack.c.l.b16 %v229
      %v355 = vunpack.c.h.b16 %v229
      %v356 = vunpack.c.l.b16 %v230
      %v357 = vunpack.c.l.b16 %v231
      %v358 = vunpack.c.h.b16 %v231
      %v359 = vunpack.c.l.b16 %v232
      %v360 = vunpack.c.l.b16 %v233
      %v361 = vunpack.c.h.b16 %v233
      %v362 = vunpack.c.l.b16 %v234
      %v363 = vunpack.c.l.b16 %v235
      %v364 = vunpack.c.h.b16 %v235
      %v365 = vunpack.c.l.b16 %v236
      %v366 = vunpack.c.l.b16 %v237
      %v367 = vunpack.c.h.b16 %v237
      %v368 = vunpack.c.l.b16 %v238
      %v369 = vunpack.c.l.b16 %v239
      %v370 = vunpack.c.h.b16 %v239
      %v371 = vunpack.c.l.b16 %v240
      %v372 = vunpack.c.l.b16 %v241
      %v373 = vunpack.c.h.b16 %v241
      %v374 = vunpack.c.l.b16 %v242
      %v375 = vunpack.c.l.b16 %v243
      %v376 = vunpack.c.h.b16 %v243
      %v377 = vunpack.c.l.b16 %v244
      %v378 = vunpack.c.l.b16 %v245
      %v379 = vunpack.c.h.b16 %v245
      %v380 = vunpack.c.l.b16 %v246
      %v381 = vunpack.c.l.b16 %v247
      %v382 = vunpack.c.h.b16 %v247
      %v383 = vunpack.c.l.b16 %v248
      %v384 = vunpack.c.l.b16 %v249
      %v385 = vunpack.c.h.b16 %v249
      %v386 = vunpack.c.l.b16 %v250
      %v387 = vunpack.c.l.b16 %v251
      %v388 = vunpack.c.h.b16 %v251
      %v389 = vunpack.c.l.b16 %v252
      %v390 = vunpack.c.l.b16 %v253
      %v391 = vunpack.c.h.b16 %v253
      %v392 = vunpack.c.l.b16 %v254
      %v393 = vunpack.c.l.b16 %v255
      %v394 = vunpack.c.h.b16 %v255
      %v395 = vunpack.c.l.b16 %v256
      %v396 = vunpack.c.l.b16 %v257
      %v397 = vunpack.c.h.b16 %v257
      %v398 = vunpack.c.l.b16 %v258
      %v399 = vunpack.c.l.b16 %v259
      %v400 = vunpack.c.h.b16 %v259
      %v401 = vunpack.c.l.b16 %v260
      %v402 = vpack.c.b16 %v333, %v330
      %v403 = vpack.c.b16 %v334, %v331
      %v404 = vpack.c.b16 %v335, %v332
      %v405 = vpack.c.b16 %v339, %v336
      %v406 = vpack.c.b16 %v340, %v337
      %v407 = vpack.c.b16 %v341, %v338
      %v408 = vpack.c.b16 %v345, %v342
      %v409 = vpack.c.b16 %v346, %v343
      %v410 = vpack.c.b16 %v347, %v344
      %v411 = vpack.c.b16 %v351, %v348
      %v412 = vpack.c.b16 %v352, %v349
      %v413 = vpack.c.b16 %v353, %v350
      %v414 = vpack.c.b16 %v357, %v354
      %v415 = vpack.c.b16 %v358, %v355
      %v416 = vpack.c.b16 %v359, %v356
      %v417 = vpack.c.b16 %v363, %v360
      %v418 = vpack.c.b16 %v364, %v361
      %v419 = vpack.c.b16 %v365, %v362
      %v420 = vpack.c.b16 %v369, %v366
      %v421 = vpack.c.b16 %v370, %v367
      %v422 = vpack.c.b16 %v371, %v368
      %v423 = vpack.c.b16 %v375, %v372
      %v424 = vpack.c.b16 %v376, %v373
      %v425 = vpack.c.b16 %v377, %v374
      %v426 = vpack.c.b16 %v381, %v378
      %v427 = vpack.c.b16 %v382, %v379
      %v428 = vpack.c.b16 %v383, %v380
      %v429 = vpack.c.b16 %v387, %v384
      %v430 = vpack.c.b16 %v388, %v385
      %v431 = vpack.c.b16 %v389, %v386
      %v432 = vpack.c.b16 %v393, %v390
      %v433 = vpack.c.b16 %v394, %v391
      %v434 = vpack.c.b16 %v395, %v392
      %v435 = vpack.c.b16 %v399, %v396
      %v436 = vpack.c.b16 %v400, %v397
      %v437 = vpack.c.b16 %v401, %v398
      %vm474 = vcmask 523264
      %v476 = vsel %vm474, %v280, 0
      %478 = vmatpush.bf16.msra.mxu0 %v423
      %479 = vmatpush.bf16.msra.mxu0 %v420
      %480 = vmatpush.bf16.msra.mxu0 %v417
      %481 = vmatpush.bf16.msra.mxu0 %v414
      %482 = vmatpush.bf16.msra.mxu0 %v411
      %483 = vmatpush.bf16.msra.mxu0 %v408
      %484 = vmatpush.bf16.msra.mxu0 %v405
      %485 = vmatpush.bf16.msra.mxu0 %v402
      %486 = vmatmul.bf16.gmra.mxu0 %v279
      %v487 = vpop.f32.mrf.mxu0
      %v488 = vadd.f32 %v266, %v487
      %v489 = vpop.f32.mrf.mxu0
      %v490 = vadd.f32 %v271, %v489
      %491 = vdwg.mxu0
      %492 = vmatpush.bf16.msra.mxu0 0
      %493 = vmatpush.bf16.msra.mxu0 0
      %494 = vmatpush.bf16.msra.mxu0 0
      %495 = vmatpush.bf16.msra.mxu0 0
      %496 = vmatpush.bf16.msra.mxu0 %v435
      %497 = vmatpush.bf16.msra.mxu0 %v432
      %498 = vmatpush.bf16.msra.mxu0 %v429
      %499 = vmatpush.bf16.msra.mxu0 %v426
      %500 = vmatmul.bf16.gmra.mxu0 %v476
      %v501 = vpop.f32.mrf.mxu0
      %v502 = vadd.f32 %v488, %v501
      %v503 = vpop.f32.mrf.mxu0
      %v504 = vadd.f32 %v490, %v503
      %505 = vdwg.mxu0
      %506 = vmatpush.bf16.msra.mxu0 %v424
      %507 = vmatpush.bf16.msra.mxu0 %v421
      %508 = vmatpush.bf16.msra.mxu0 %v418
      %509 = vmatpush.bf16.msra.mxu0 %v415
      %510 = vmatpush.bf16.msra.mxu0 %v412
      %511 = vmatpush.bf16.msra.mxu0 %v409
      %512 = vmatpush.bf16.msra.mxu0 %v406
      %513 = vmatpush.bf16.msra.mxu0 %v403
      %514 = vmatmul.bf16.gmra.mxu0 %v279
      %v515 = vpop.f32.mrf.mxu0
      %v516 = vadd.f32 %v266, %v515
      %v517 = vpop.f32.mrf.mxu0
      %v518 = vadd.f32 %v271, %v517
      %519 = vdwg.mxu0
      %520 = vmatpush.bf16.msra.mxu0 0
      %521 = vmatpush.bf16.msra.mxu0 0
      %522 = vmatpush.bf16.msra.mxu0 0
      %523 = vmatpush.bf16.msra.mxu0 0
      %524 = vmatpush.bf16.msra.mxu0 %v436
      %525 = vmatpush.bf16.msra.mxu0 %v433
      %526 = vmatpush.bf16.msra.mxu0 %v430
      %527 = vmatpush.bf16.msra.mxu0 %v427
      %528 = vmatmul.bf16.gmra.mxu0 %v476
      %v529 = vpop.f32.mrf.mxu0
      %v530 = vadd.f32 %v516, %v529
      %v531 = vpop.f32.mrf.mxu0
      %v532 = vadd.f32 %v518, %v531
      %533 = vdwg.mxu0
      %534 = vmatpush.bf16.msra.mxu0 %v425
      %535 = vmatpush.bf16.msra.mxu0 %v422
      %536 = vmatpush.bf16.msra.mxu0 %v419
      %537 = vmatpush.bf16.msra.mxu0 %v416
      %538 = vmatpush.bf16.msra.mxu0 %v413
      %539 = vmatpush.bf16.msra.mxu0 %v410
      %540 = vmatpush.bf16.msra.mxu0 %v407
      %541 = vmatpush.bf16.msra.mxu0 %v404
      %542 = vmatmul.bf16.gmra.mxu0 %v279
      %v543 = vpop.f32.mrf.mxu0
      %v544 = vadd.f32 %v266, %v543
      %v545 = vpop.f32.mrf.mxu0
      %v546 = vadd.f32 %v271, %v545
      %547 = vdwg.mxu0
      %548 = vmatpush.bf16.msra.mxu0 0
      %549 = vmatpush.bf16.msra.mxu0 0
      %550 = vmatpush.bf16.msra.mxu0 0
      %551 = vmatpush.bf16.msra.mxu0 0
      %552 = vmatpush.bf16.msra.mxu0 %v437
      %553 = vmatpush.bf16.msra.mxu0 %v434
      %554 = vmatpush.bf16.msra.mxu0 %v431
      %555 = vmatpush.bf16.msra.mxu0 %v428
      %556 = vmatmul.bf16.gmra.mxu0 %v476
      %v557 = vpop.f32.mrf.mxu0
      %v558 = vadd.f32 %v544, %v557
      %v559 = vpop.f32.mrf.mxu0
      %v560 = vadd.f32 %v546, %v559
      %561 = vdwg.mxu0
      %v562 = vmax.f32 %v502, 0.0
      %v563 = vmax.f32 %v530, 0.0
      %v564 = vmax.f32 %v558, 0.0
      %v565 = vmax.f32 %v504, 0.0
      %v566 = vmax.f32 %v532, 0.0
      %v567 = vmax.f32 %v560, 0.0
      %v568 = vmax.f32 %v562, %v565
      %v569 = vrot.slane %v568, 4
      %v570 = vmax.f32 %v568, %v569
      %v571 = vrot.slane %v570, 2
      %v572 = vmax.f32 %v570, %v571
      %v573 = vrot.slane %v572, 1
      %v574 = vmax.f32 %v572, %v573
      %v575 = vmax.f32 %v563, %v566
      %v576 = vrot.slane %v575, 4
      %v577 = vmax.f32 %v575, %v576
      %v578 = vrot.slane %v577, 2
      %v579 = vmax.f32 %v577, %v578
      %v580 = vrot.slane %v579, 1
      %v581 = vmax.f32 %v579, %v580
      %v582 = vmax.f32 %v564, %v567
      %v583 = vrot.slane %v582, 4
      %v584 = vmax.f32 %v582, %v583
      %v585 = vrot.slane %v584, 2
      %v586 = vmax.f32 %v584, %v585
      %v587 = vrot.slane %v586, 1
      %v588 = vmax.f32 %v586, %v587
      %v589 = vsub.f32 %v562, %v574
      %v590 = vsub.f32 %v563, %v581
      %v591 = vsub.f32 %v564, %v588
      %v592 = vsub.f32 %v565, %v574
      %v593 = vsub.f32 %v566, %v581
      %v594 = vsub.f32 %v567, %v588
      %v595 = vmul.f32 %v589, 1.442695
      %v596 = vpow.pop %v595
      %v597 = vmul.f32 %v590, 1.442695
      %v598 = vpow.pop %v597
      %v599 = vmul.f32 %v591, 1.442695
      %v600 = vpow.pop %v599
      %v601 = vmul.f32 %v592, 1.442695
      %v602 = vpow.pop %v601
      %v603 = vmul.f32 %v593, 1.442695
      %v604 = vpow.pop %v603
      %v605 = vmul.f32 %v594, 1.442695
      %v606 = vpow.pop %v605
      %v607 = vadd.f32 %v596, %v602
      %v608 = vrot.slane %v607, 4
      %v609 = vadd.f32 %v607, %v608
      %v610 = vrot.slane %v609, 2
      %v611 = vadd.f32 %v609, %v610
      %v612 = vrot.slane %v611, 1
      %v613 = vadd.f32 %v611, %v612
      %v614 = vadd.f32 %v598, %v604
      %v615 = vrot.slane %v614, 4
      %v616 = vadd.f32 %v614, %v615
      %v617 = vrot.slane %v616, 2
      %v618 = vadd.f32 %v616, %v617
      %v619 = vrot.slane %v618, 1
      %v620 = vadd.f32 %v618, %v619
      %v621 = vadd.f32 %v600, %v606
      %v622 = vrot.slane %v621, 4
      %v623 = vadd.f32 %v621, %v622
      %v624 = vrot.slane %v623, 2
      %v625 = vadd.f32 %v623, %v624
      %v626 = vrot.slane %v625, 1
      %v627 = vadd.f32 %v625, %v626
      %v628 = vlog2.pop %v613
      %v629 = vmul.f32 %v628, 0.6931472
      %v630 = vlog2.pop %v620
      %v631 = vmul.f32 %v630, 0.6931472
      %v632 = vlog2.pop %v627
      %v633 = vmul.f32 %v632, 0.6931472
      %v634 = vsub.f32 %v589, %v629
      %v635 = vsub.f32 %v590, %v631
      %v636 = vsub.f32 %v591, %v633
      %v637 = vsub.f32 %v592, %v629
      %v638 = vsub.f32 %v593, %v631
      %v639 = vsub.f32 %v594, %v633
      %640 = vst [vmem:[%s208] sm:$0xff] %v634
      %641 = vst [vmem:[%s208 + $0x8] sm:$0xff] %v635
      %642 = vst [vmem:[%s208 + $0x10] sm:$0xff] %v636
      %643 = vst [vmem:[%s208 + $0x18] sm:$0xff] %v637
      %644 = vst [vmem:[%s208 + $0x20] sm:$0xff] %v638
      %645 = vst [vmem:[%s208 + $0x28] sm:$0xff] %v639
      %s646 = smul.u32 3, %s19
      %p647 = scmp.lt.s32.totalorder %s18, 1
      %s648 = scalar_select %p647, %s18, 1
      %p649 = scmp.lt.s32.totalorder %s646, 2
      %s650 = scalar_select %p649, %s646, 2
      %s651 = smul.addr %s648, 6
      %s652 = sadd.s32 %s650, %s651
      %s653 = smul.addr %s652, 8
      %s654 = scalar_lea.vmem %s3, %s653
      // Predicated region
      $region33: #{net_1d_forward.1} parent=31 // pred_check
        %p655 = pneg %p116
      $region34: #{net_1d_forward.1} parent=31 // pred_check_branch
        %657 = sbr.rel (%p655) target = $region36
      $region35: #{net_1d_forward.1} parent=31 // pred_region
        %s658 = smul.u32 3, %s19
      $region36: #{net_1d_forward.1} parent=31 // pred_fallthru
        _
    $region32: #{net_1d_forward.1} parent=5 // pred_fallthru
      _
    %p659 = scmp.le.s32.totalorder 2, %s9
    // Predicated region
    $region37: #{net_1d_forward.1} parent=5 // pred_check
      %p660 = pneg %p659
    $region38: #{net_1d_forward.1} parent=5 // pred_check_branch
      %662 = sbr.rel (%p660) target = $region40
    $region39: #{net_1d_forward.1} parent=5 // pred_region
      %s663 = ssub.s32 %s9, 2
      // Predicated region
      $region41: #{net_1d_forward.1} parent=39 // pred_check
        %p664 = pneg %p122
      $region42: #{net_1d_forward.1} parent=39 // pred_check_branch
        %666 = sbr.rel (%p664) target = $region44
      $region43: #{net_1d_forward.1} parent=39 // pred_region
        %s667 = smul.u32 3, %s21
        %p668 = scmp.lt.s32.totalorder %s20, 1
        %s669 = scalar_select %p668, %s20, 1
        %p670 = scmp.lt.s32.totalorder %s667, 2
        %s671 = scalar_select %p670, %s667, 2
        %s672 = smul.addr %s669, 6
        %s673 = sadd.s32 %s671, %s672
        %s674 = smul.addr %s673, 8
        %s675 = scalar_lea.vmem %s3, %s674
      $region44: #{net_1d_forward.1} parent=39 // pred_fallthru
        _
    $region40: #{net_1d_forward.1} parent=5 // pred_fallthru
      _
  $region6: #{net_1d_forward.1} parent=0 // loop_footer
    %s13 = sadd.s32 1, %s9
  $region7: #{net_1d_forward.1} parent=0 // loop_footer_branch
    %8 = sbr.rel target = $region3
  $region8: #{net_1d_forward.1} parent=0 // loop_exit
    _

</llo_original>
